<compile_context>
chip_gen: v7x
topology: tpu7x:2x2x1
jax: 0.10.0
libtpu: 0.0.40
codegen_flags: <defaults>
</compile_context>

<pallas_src>
import functools

import jax
import jax.numpy as jnp
from jax.experimental import pallas as pl
from jax.experimental.pallas import tpu as pltpu


# ----------------------------- helpers ---------------------------------------

def _round_up(x, m):
    return (x + m - 1) // m * m


def _pick_tile(padded, cap=512):
    """Largest of (512, 256, 128) <= cap that divides `padded` (a multiple of 128)."""
    for t in (512, 256, 128):
        if t <= cap and padded % t == 0:
            return t
    return 128


# ----------------------------- Pallas kernel ---------------------------------

def _linear_bias_kernel(x_ref, w_ref, b_ref, o_ref):
    """One (tm, tn) output tile; accumulates directly into the resident f32 out block."""
    k = pl.program_id(2)

    @pl.when(k == 0)
    def _init():
        # Bias add folded into accumulator init (one fewer VPU pass over the tile).
        o_ref[...] = jnp.broadcast_to(b_ref[...], o_ref.shape)

    # f32 activations cast to bf16 on the VPU (hidden under the MXU),
    # bf16 weights, f32 accumulation straight into o_ref.
    o_ref[...] += jnp.dot(x_ref[...].astype(jnp.bfloat16), w_ref[...],
                          preferred_element_type=jnp.float32)


# ----------------------------- param preparation -----------------------------

def init_fc_params(key, in_channels, kernel_size, start_out_channels):
    """PyTorch nn.Linear-style init. Returns None for the Identity case."""
    if start_out_channels is None:
        return None
    f_in = in_channels * kernel_size[0] * kernel_size[1]
    bound = 1.0 / (f_in ** 0.5)
    kw, kb = jax.random.split(key)
    return {
        "w": jax.random.uniform(kw, (start_out_channels, f_in),
                                jnp.float32, -bound, bound),
        "b": jax.random.uniform(kb, (start_out_channels,),
                                jnp.float32, -bound, bound),
    }


def prep_fc_params(w, b):
    """One-time prep (hoisted out of the per-call path):

    - w.T cast to bf16                      -> "wt"  [F, Cout]   (fast path)
    - padded bf16 weight [Kp, Cp]           -> "wp"              (kernel path)
    - padded f32 bias    [1, Cp]            -> "bp"              (kernel path)
    - f32 bias                              -> "b"   [Cout]      (fast path)
    """
    Cout, F = w.shape
    Kp = _round_up(F, 128)
    Cp = _round_up(Cout, 128)
    wt = w.T.astype(jnp.bfloat16)
    wp = jnp.zeros((Kp, Cp), jnp.bfloat16).at[:F, :Cout].set(wt)
    bp = jnp.zeros((1, Cp), jnp.float32).at[0, :Cout].set(b.astype(jnp.float32))
    return {"wt": wt, "b": b.astype(jnp.float32), "wp": wp, "bp": bp}


# ----------------------------- linear (Pallas) --------------------------------

def pallas_linear(x2d, prep, *, allow_fast_path=True):
    """y = x2d @ W.T + b  (W, b prepared once via prep_fc_params)."""
    N = x2d.shape[0]
    F, Cout = prep["wt"].shape            # static
    Kp, Cp = prep["wp"].shape             # static, padded
    assert x2d.shape[1] == F, (x2d.shape, F)

    tm = min(256, _round_up(max(N, 1), 16))    # bf16 sublane-friendly row tile
    Mp = _round_up(max(N, 1), tm)
    tk = _pick_tile(Kp)                        # reduction tile
    tn = _pick_tile(Cp)                        # output-feature tile (parallel)
    grid = (Mp // tm, Cp // tn, Kp // tk)

    if allow_fast_path and grid == (1, 1, 1):
        # Single-tile GEMM: fixed pallas_call + pad + slice overhead dominates;
        # let XLA fuse the tiny dot + bias.
        return (jnp.dot(x2d.astype(jnp.bfloat16), prep["wt"],
                        preferred_element_type=jnp.float32) + prep["b"])

    # Activations stay f32; pad only if required by the tiling.
    if (Mp, Kp) == (N, F):
        xp = x2d.astype(jnp.float32)
    else:
        xp = jnp.zeros((Mp, Kp), jnp.float32).at[:N, :F].set(
            x2d.astype(jnp.float32))

    # Double-buffered x / w / bias blocks + double-buffered resident f32 out block.
    block_bytes = 2 * (tm * tk * 4 + tk * tn * 2 + tn * 4) + 2 * (tm * tn * 4)
    vmem_limit = int(min(64 << 20, max(8 << 20, 2 * block_bytes)))

    out = pl.pallas_call(
        _linear_bias_kernel,
        out_shape=jax.ShapeDtypeStruct((Mp, Cp), jnp.float32),
        grid_spec=pltpu.PrefetchScalarGridSpec(
            num_scalar_prefetch=0,
            grid=grid,
            in_specs=[
                pl.BlockSpec((tm, tk), lambda i, j, k: (i, k)),   # activations (f32)
                pl.BlockSpec((tk, tn), lambda i, j, k: (k, j)),   # weights (bf16)
                pl.BlockSpec((1, tn), lambda i, j, k: (0, j)),    # bias (f32)
            ],
            out_specs=pl.BlockSpec((tm, tn), lambda i, j, k: (i, j)),
        ),
        compiler_params=pltpu.CompilerParams(
            dimension_semantics=("parallel", "parallel", "arbitrary"),
            vmem_limit_bytes=vmem_limit),
        cost_estimate=pl.CostEstimate(
            flops=2 * N * F * Cout,
            transcendentals=0,
            bytes_accessed=N * F * 4 + F * Cout * 2 + Cout * 4 + N * Cout * 4),
    )(xp, prep["wp"], prep["bp"])

    return out[:N, :Cout]


# ------------------------------ FCPreprocess ----------------------------------

def fc_preprocess_forward(params, storage, *, allow_fast_path=True):
    """Pallas/JAX equivalent of FCPreprocess.forward.

    params  : output of prep_fc_params (Linear case) or None (Identity case).
    storage : the tensor previously pushed via store_result, e.g. [N, C, kh, kw].
    """
    n = storage.shape[0]
    x = storage.reshape(n, -1)                               # x.flatten(1)
    if params is None:                                       # self.fc = nn.Identity()
        y = x.astype(jnp.float32)
    else:                                                    # self.fc = nn.Linear(...)
        y = pallas_linear(x, params, allow_fast_path=allow_fast_path)
    out = y.reshape(n, y.shape[1], 1, 1)                     # x.view(N, C, 1, 1)
    # TODO(synk): the PyTorch forward returns None and pushes `out` into each
    # downstream edge via edge.store_result(out); here we return the tensor.
    return out


# ------------------------------- demo / checks ---------------------------------

if __name__ == "__main__":
    key = jax.random.PRNGKey(0)
    k1, k2, k3, k4 = jax.random.split(key, 4)

    # ---- Case A: multi-tile GEMM that exercises the Pallas kernel ------------
    batch, in_channels, kernel_size = 2, 4, (16, 16)          # F = 1024
    start_out_channels = 384                                  # 3 Cout tiles, 2 K tiles
    f_in = in_channels * kernel_size[0] * kernel_size[1]

    raw = init_fc_params(k1, in_channels, kernel_size, start_out_channels)
    prepped = prep_fc_params(raw["w"], raw["b"])              # hoisted, done once
    storage = jax.random.normal(
        k2, (batch, in_channels, kernel_size[0], kernel_size[1]), jnp.float32)

    fwd = jax.jit(functools.partial(fc_preprocess_forward, allow_fast_path=True))
    out = jax.block_until_ready(fwd(prepped, storage))
    assert out.shape == (batch, start_out_channels, 1, 1), out.shape
    assert bool(jnp.all(jnp.isfinite(out)))

    x2d = storage.reshape(batch, -1)
    ref_bf16 = (jnp.dot(x2d.astype(jnp.bfloat16), prepped["wt"],
                        preferred_element_type=jnp.float32) + prepped["b"]
                ).reshape(batch, start_out_channels, 1, 1)
    err = float(jnp.max(jnp.abs(out - ref_bf16)))
    assert bool(jnp.allclose(out, ref_bf16, atol=2e-2, rtol=2e-2)), err

    # ---- Case B: typical tiny FCPreprocess shape (single tile) ---------------
    batch_b, in_ch_b, ks_b, cout_b = 2, 4, (4, 8), 128        # F = 128
    raw_b = init_fc_params(k3, in_ch_b, ks_b, cout_b)
    prepped_b = prep_fc_params(raw_b["w"], raw_b["b"])
    storage_b = jax.random.normal(
        k4, (batch_b, in_ch_b, ks_b[0], ks_b[1]), jnp.float32)
    ref_b = (storage_b.reshape(batch_b, -1) @ raw_b["w"].T + raw_b["b"]
             ).reshape(batch_b, cout_b, 1, 1)

    # B1: fused no-kernel fast path (default).
    out_b = jax.block_until_ready(jax.jit(fc_preprocess_forward)(prepped_b, storage_b))
    assert out_b.shape == (batch_b, cout_b, 1, 1), out_b.shape
    assert bool(jnp.allclose(out_b, ref_b, atol=5e-2, rtol=5e-2))

    # B2: same shape forced through the Pallas kernel (checks M/K padding path).
    fwd_kernel = jax.jit(functools.partial(fc_preprocess_forward,
                                           allow_fast_path=False))
    out_b2 = jax.block_until_ready(fwd_kernel(prepped_b, storage_b))
    assert bool(jnp.allclose(out_b2, ref_b, atol=5e-2, rtol=5e-2))

    # ---- Case C: Identity path (start_out_channels=None) ---------------------
    out_id = jax.block_until_ready(jax.jit(fc_preprocess_forward)(None, storage_b))
    assert out_id.shape == (batch_b, in_ch_b * ks_b[0] * ks_b[1], 1, 1), out_id.shape
    assert bool(jnp.allclose(out_id.reshape(batch_b, -1),
                             storage_b.reshape(batch_b, -1)))

    print("KERNEL_OK")
</pallas_src>

<mosaic_0001>
module attributes {stable_mosaic.version = 11 : i64} {
  func.func @_linear_bias_kernel(%arg0: i32, %arg1: i32, %arg2: i32, %arg3: memref<16x512xf32, #tpu.memory_space<vmem>>, %arg4: memref<512x128xbf16, #tpu.memory_space<vmem>>, %arg5: memref<1x128xf32, #tpu.memory_space<vmem>>, %arg6: memref<16x128xf32, #tpu.memory_space<vmem>>) attributes {dimension_semantics = [#tpu.dimension_semantics<parallel>, #tpu.dimension_semantics<parallel>, #tpu.dimension_semantics<arbitrary>], iteration_bounds = array<i64: 1, 3, 2>, scalar_prefetch = 0 : i64, scratch_operands = 0 : i64, tpu.core_type = #tpu.core_type<tc>, window_params = [{transform_indices = @transform_0, window_bounds = array<i64: 16, 512>}, {transform_indices = @transform_1, window_bounds = array<i64: 512, 128>}, {transform_indices = @transform_2, window_bounds = array<i64: 1, 128>}, {transform_indices = @transform_3, window_bounds = array<i64: 16, 128>}]} {
    %c0_i32 = arith.constant 0 : i32
    %0 = arith.cmpi eq, %arg2, %c0_i32 : i32
    %1 = arith.extui %0 : i1 to i32
    %c0_i32_0 = arith.constant 0 : i32
    %2 = arith.cmpi ne, %1, %c0_i32_0 : i32
    scf.if %2 {
      %c0_8 = arith.constant 0 : index
      %c0_9 = arith.constant 0 : index
      %10 = vector.load %arg5[%c0_8, %c0_9] : memref<1x128xf32, #tpu.memory_space<vmem>>, vector<1x128xf32>
      %11 = vector.shape_cast %10 : vector<1x128xf32> to vector<1x128xf32>
      %12 = vector.broadcast %11 : vector<1x128xf32> to vector<16x128xf32>
      %c0_10 = arith.constant 0 : index
      %c0_11 = arith.constant 0 : index
      %13 = vector.load %arg6[%c0_10, %c0_11] : memref<16x128xf32, #tpu.memory_space<vmem>>, vector<16x128xf32>
      tpu.vector_store %arg6[%c0_10, %c0_11], %12 {strides = array<i32>} : memref<16x128xf32, #tpu.memory_space<vmem>>, vector<16x128xf32>,
    } else {
    }
    %c0 = arith.constant 0 : index
    %c0_1 = arith.constant 0 : index
    %3 = vector.load %arg6[%c0, %c0_1] : memref<16x128xf32, #tpu.memory_space<vmem>>, vector<16x128xf32>
    %c0_2 = arith.constant 0 : index
    %c0_3 = arith.constant 0 : index
    %4 = vector.load %arg3[%c0_2, %c0_3] : memref<16x512xf32, #tpu.memory_space<vmem>>, vector<16x512xf32>
    %5 = arith.truncf %4 : vector<16x512xf32> to vector<16x512xbf16>
    %c0_4 = arith.constant 0 : index
    %c0_5 = arith.constant 0 : index
    %6 = vector.load %arg4[%c0_4, %c0_5] : memref<512x128xbf16, #tpu.memory_space<vmem>>, vector<512x128xbf16>
    %cst = arith.constant dense<0.000000e+00> : vector<16x128xf32>
    %7 = tpu.matmul %5, %6, %cst {dimension_numbers = #tpu.dot_dimension_numbers<[1], [0], [0], [1], [0, 0, 1, 1], [], []>} : vector<16x512xbf16>, vector<512x128xbf16>, vector<16x128xf32> -> vector<16x128xf32>
    %8 = arith.addf %3, %7 : vector<16x128xf32>
    %c0_6 = arith.constant 0 : index
    %c0_7 = arith.constant 0 : index
    %9 = vector.load %arg6[%c0_6, %c0_7] : memref<16x128xf32, #tpu.memory_space<vmem>>, vector<16x128xf32>
    tpu.vector_store %arg6[%c0_6, %c0_7], %8 {strides = array<i32>} : memref<16x128xf32, #tpu.memory_space<vmem>>, vector<16x128xf32>,
    return
  }
  func.func @transform_0(%arg0: i32, %arg1: i32, %arg2: i32) -> (i32, i32) {
    %c0_i32 = arith.constant 0 : i32
    return %arg0, %arg2 : i32, i32
  }
  func.func @transform_1(%arg0: i32, %arg1: i32, %arg2: i32) -> (i32, i32) {
    %c0_i32 = arith.constant 0 : i32
    return %arg2, %arg1 : i32, i32
  }
  func.func @transform_2(%arg0: i32, %arg1: i32, %arg2: i32) -> (i32, i32) {
    %c0_i32 = arith.constant 0 : i32
    %c0_i32_0 = arith.constant 0 : i32
    return %c0_i32, %arg1 : i32, i32
  }
  func.func @transform_3(%arg0: i32, %arg1: i32, %arg2: i32) -> (i32, i32) {
    %c0_i32 = arith.constant 0 : i32
    return %arg0, %arg1 : i32, i32
  }
}

</mosaic_0001>

<llo_original>
// kernel: fc_preprocess_forward.1
$region0: #{fc_preprocess_forward.1}
  #allocation0 [shape = 'u32[]', space=smem, size = 0x4, offset = 0x4, fixed_abs, tag = 'smem constant byte address 0x4 - core index']
  #allocation1 [shape = 'u32[144,128]{1,0:T(1,128)}', space=vmem, size = 0x12000, scoped, tag = 'internal scratch']
  %s0 = inlined_call_operand.vmem [shape: f32[16,1024], index: 0, kind: input, shape index: {}]
  %s1 = inlined_call_operand.hbm [shape: bf16[1024,384], index: 1, kind: input, shape index: {}]
  %s2 = inlined_call_operand.vmem [shape: f32[1,384], index: 2, kind: input, shape index: {}]
  %s3 = inlined_call_operand.vmem [shape: f32[16,384], index: 3, kind: output, shape index: {}]
  %s4 = sld [smem:[#allocation0]]
  $region110: #{fc_preprocess_forward.1} parent=0
    _
  %s6 = ssub.s32 1, %s4
  %s7 = scalar_select 0, %s6, %s4
  $region1: #{fc_preprocess_forward.1} parent=0
    #allocation2 [shape = 'u8[65536]{0}', space=vmem, size = 0x10000, scoped, tag = 'input window, operand 0']
    #allocation3 [shape = 'u8[262144]{0}', space=vmem, size = 0x40000, scoped, tag = 'input window, operand 1']
    #allocation4 [shape = 's32[2]{0}', space=sflag, size = 0x8, scoped, tag = 'scoped memory for fc_preprocess_forward.1']
    #allocation5 [shape = 'u8[16384]{0}', space=vmem, size = 0x4000, scoped, tag = 'output window, operand 0']
    %8 = vsyncpa [#allocation4], 0
    %s9 = scalar_lea.sflag [#allocation4], 1
    %10 = vsyncpa %s9, 0
    loop: start=0, step=1, limit=8
    $region2: #{fc_preprocess_forward.1} parent=1 // loop_pre_header
      _
    $region3: #{fc_preprocess_forward.1} parent=1 // loop_header
      %s12 = sphi 0, %s16
      %p13 = scmp.ge.s32.totalorder %s12, 8
      %s19 = sphi 0, %s38
      %s20 = sphi 0, %s34
      %s21 = sphi 0, %s30
      %s22 = sphi 0, %s19
      %s23 = sphi 0, %s20
      %s24 = sphi 0, %s21
      %s25 = sphi 0, %s22
      %s26 = sphi 0, %s23
      %s27 = sphi 0, %s24
      %s43 = sphi 0, %s45
      %s46 = sphi 0, %s43
      %s47 = sphi 0, %s46
      %s63 = sphi 0, %s47
      %s71 = sphi 0, %s73
      %s74 = sphi 0, %s71
      %s75 = sphi 0, %s74
      %s91 = sphi 0, %s75
      %s97 = sphi 0, %s99
      %s100 = sphi 0, %s97
      %s101 = sphi 0, %s100
      %s117 = sphi 0, %s101
      %s125 = sphi 0, %s127
      %s128 = sphi 0, %s125
      %s129 = sphi 0, %s128
      %s145 = sphi 0, %s129
    $region4: #{fc_preprocess_forward.1} parent=1 // loop_header_branch
      %15 = sbr.rel (%p13) target = $region8
    $region5: #{fc_preprocess_forward.1} parent=1 // loop_body
      %s17 = ssub.s32 %s12, 1
      %s18 = ssub.s32 %s12, 2
      %s28 = sadd.s32 1, %s21
      %p29 = scmp.ge.s32.totalorder %s28, 2
      %s30 = scalar_select %p29, 0, %s28
      %s31 = sadd.s32 1, %s20
      %s32 = scalar_select %p29, %s31, %s20
      %p33 = scmp.ge.s32.totalorder %s32, 3
      %s34 = scalar_select %p33, 0, %s32
      %s35 = sadd.s32 1, %s19
      %s36 = scalar_select %p33, %s35, %s19
      %p37 = scmp.ge.s32.totalorder %s36, 1
      %s38 = scalar_select %p37, 0, %s36
      %s39 = ssub.s32 %s19, %s38
      %s40 = ssub.s32 %s21, %s30
      %s41 = sor.u32 %s39, %s40
      %p42 = scmp.eq.s32.totalorder %s41, 0
      %s44 = sadd.s32 %s43, 1
      %s45 = scalar_select %p42, %s43, %s44
      %p48 = pneg %p42
      %p49 = scmp.eq.s32.totalorder %s12, 5
      %p50 = por %p48, %p49
      %p51 = scmp.ne.s32.totalorder %s43, %s46
      %p52 = scmp.eq.s32.totalorder %s12, 0
      %p53 = por %p51, %p52
      %p54 = scmp.ne.s32.totalorder %s43, %s46
      %p55 = scmp.eq.s32.totalorder %s17, 5
      %p56 = por %p54, %p55
      %p57 = scmp.ne.s32.totalorder %s46, %s47
      %p58 = scmp.eq.s32.totalorder %s17, 0
      %p59 = por %p57, %p58
      %p60 = scmp.ne.s32.totalorder %s46, %s47
      %p61 = scmp.eq.s32.totalorder %s18, 5
      %p62 = por %p60, %p61
      %p64 = scmp.ne.s32.totalorder %s47, %s63
      %p65 = scmp.eq.s32.totalorder %s18, 0
      %p66 = por %p64, %p65
      %s67 = ssub.s32 %s21, %s30
      %s68 = ssub.s32 %s20, %s34
      %s69 = sor.u32 %s67, %s68
      %p70 = scmp.eq.s32.totalorder %s69, 0
      %s72 = sadd.s32 %s71, 1
      %s73 = scalar_select %p70, %s71, %s72
      %p76 = pneg %p70
      %p77 = scmp.eq.s32.totalorder %s12, 5
      %p78 = por %p76, %p77
      %p79 = scmp.ne.s32.totalorder %s71, %s74
      %p80 = scmp.eq.s32.totalorder %s12, 0
      %p81 = por %p79, %p80
      %p82 = scmp.ne.s32.totalorder %s71, %s74
      %p83 = scmp.eq.s32.totalorder %s17, 5
      %p84 = por %p82, %p83
      %p85 = scmp.ne.s32.totalorder %s74, %s75
      %p86 = scmp.eq.s32.totalorder %s17, 0
      %p87 = por %p85, %p86
      %p88 = scmp.ne.s32.totalorder %s74, %s75
      %p89 = scmp.eq.s32.totalorder %s18, 5
      %p90 = por %p88, %p89
      %p92 = scmp.ne.s32.totalorder %s75, %s91
      %p93 = scmp.eq.s32.totalorder %s18, 0
      %p94 = por %p92, %p93
      %s95 = ssub.s32 %s20, %s34
      %p96 = scmp.eq.s32.totalorder %s95, 0
      %s98 = sadd.s32 %s97, 1
      %s99 = scalar_select %p96, %s97, %s98
      %p102 = pneg %p96
      %p103 = scmp.eq.s32.totalorder %s12, 5
      %p104 = por %p102, %p103
      %p105 = scmp.ne.s32.totalorder %s97, %s100
      %p106 = scmp.eq.s32.totalorder %s12, 0
      %p107 = por %p105, %p106
      %p108 = scmp.ne.s32.totalorder %s97, %s100
      %p109 = scmp.eq.s32.totalorder %s17, 5
      %p110 = por %p108, %p109
      %p111 = scmp.ne.s32.totalorder %s100, %s101
      %p112 = scmp.eq.s32.totalorder %s17, 0
      %p113 = por %p111, %p112
      %p114 = scmp.ne.s32.totalorder %s100, %s101
      %p115 = scmp.eq.s32.totalorder %s18, 5
      %p116 = por %p114, %p115
      %p118 = scmp.ne.s32.totalorder %s101, %s117
      %p119 = scmp.eq.s32.totalorder %s18, 0
      %p120 = por %p118, %p119
      %s121 = ssub.s32 %s19, %s38
      %s122 = ssub.s32 %s20, %s34
      %s123 = sor.u32 %s121, %s122
      %p124 = scmp.eq.s32.totalorder %s123, 0
      %s126 = sadd.s32 %s125, 1
      %s127 = scalar_select %p124, %s125, %s126
      %p130 = pneg %p124
      %p131 = scmp.eq.s32.totalorder %s12, 5
      %p132 = por %p130, %p131
      %p133 = scmp.ne.s32.totalorder %s125, %s128
      %p134 = scmp.eq.s32.totalorder %s12, 0
      %p135 = por %p133, %p134
      %p136 = scmp.ne.s32.totalorder %s125, %s128
      %p137 = scmp.eq.s32.totalorder %s17, 5
      %p138 = por %p136, %p137
      %p139 = scmp.ne.s32.totalorder %s128, %s129
      %p140 = scmp.eq.s32.totalorder %s17, 0
      %p141 = por %p139, %p140
      %p142 = scmp.ne.s32.totalorder %s128, %s129
      %p143 = scmp.eq.s32.totalorder %s18, 5
      %p144 = por %p142, %p143
      %p146 = scmp.ne.s32.totalorder %s129, %s145
      %p147 = scmp.eq.s32.totalorder %s18, 0
      %p148 = por %p146, %p147
      %p149 = scmp.le.s32.totalorder 1, %s12
      %p150 = scmp.lt.s32.totalorder %s12, 7
      %p151 = pnand %p149, %p150
      %p152 = pneg %p151
      // Predicated region
      $region9: #{fc_preprocess_forward.1} parent=5 // pred_check
        _
      $region10: #{fc_preprocess_forward.1} parent=5 // pred_check_branch
        %154 = sbr.rel (%p151) target = $region12
      $region11: #{fc_preprocess_forward.1} parent=5 // pred_region
        %s155 = ssub.s32 %s12, 1
      $region12: #{fc_preprocess_forward.1} parent=5 // pred_fallthru
        _
      %p156 = scmp.lt.s32.totalorder %s12, 6
      // Predicated region
      $region13: #{fc_preprocess_forward.1} parent=5 // pred_check
        %p157 = pneg %p156
      $region14: #{fc_preprocess_forward.1} parent=5 // pred_check_branch
        %159 = sbr.rel (%p157) target = $region16
      $region15: #{fc_preprocess_forward.1} parent=5 // pred_region
        // Predicated region
        $region17: #{fc_preprocess_forward.1} parent=15 // pred_check
          %p160 = pneg %p53
        $region18: #{fc_preprocess_forward.1} parent=15 // pred_check_branch
          %162 = sbr.rel (%p160) target = $region20
        $region19: #{fc_preprocess_forward.1} parent=15 // pred_region
          %s163 = sand.u32 %s43, 1
          %s164 = sand.u32 %s43, 1
          %s165 = smul.addr %s164, 64
          %s166 = scalar_lea.vmem [#allocation2], %s165
          %s167 = smul.u32 2, %s19
          %s168 = smul.u32 4, %s21
          %s169 = smul.addr %s167, 8
          %s170 = sadd.s32 %s168, %s169
          %s171 = smul.addr %s170, 8
          %s172 = scalar_lea.vmem %s0, %s171
          // Predicated region
          $region21: #{fc_preprocess_forward.1} parent=19 // pred_check
            _
          $region22: #{fc_preprocess_forward.1} parent=19 // pred_check_branch
            %174 = sbr.rel (0) target = $region24
          $region23: #{fc_preprocess_forward.1} parent=19 // pred_region
            // Predicated region
            $region25: #{fc_preprocess_forward.1} parent=23 // pred_check
              _
            $region26: #{fc_preprocess_forward.1} parent=23 // pred_check_branch
              %176 = sbr.rel (0) target = $region28
            $region27: #{fc_preprocess_forward.1} parent=23 // pred_region
              loop: start=0, step=1, limit=1
              $region29: #{fc_preprocess_forward.1} parent=27 // loop_pre_header
                _
              $region30: #{fc_preprocess_forward.1} parent=27 // loop_header
                %s178 = sphi 0, %s182
                %p179 = scmp.ge.s32.totalorder %s178, 1
                %s183 = sphi %s172, %s172
                %s184 = sphi %s166, %s166
              $region31: #{fc_preprocess_forward.1} parent=27 // loop_header_branch
                %181 = sbr.rel (%p179) target = $region35
              $region32: #{fc_preprocess_forward.1} parent=27 // loop_body
                %v185 = vld [vmem:[%s183] sm:$0xff]
                %186 = vst [vmem:[%s184] sm:$0xff] %v185
                %v187 = vld [vmem:[%s183 + $0x8] sm:$0xff]
                %188 = vst [vmem:[%s184 + $0x8] sm:$0xff] %v187
                %v189 = vld [vmem:[%s183 + $0x10] sm:$0xff]
                %190 = vst [vmem:[%s184 + $0x10] sm:$0xff] %v189
                %v191 = vld [vmem:[%s183 + $0x18] sm:$0xff]
                %192 = vst [vmem:[%s184 + $0x18] sm:$0xff] %v191
                %v193 = vld [vmem:[%s183 + $0x40] sm:$0xff]
                %194 = vst [vmem:[%s184 + $0x20] sm:$0xff] %v193
                %v195 = vld [vmem:[%s183 + $0x48] sm:$0xff]
                %196 = vst [vmem:[%s184 + $0x28] sm:$0xff] %v195
                %v197 = vld [vmem:[%s183 + $0x50] sm:$0xff]
                %198 = vst [vmem:[%s184 + $0x30] sm:$0xff] %v197
                %v199 = vld [vmem:[%s183 + $0x58] sm:$0xff]
                %200 = vst [vmem:[%s184 + $0x38] sm:$0xff] %v199
              $region33: #{fc_preprocess_forward.1} parent=27 // loop_footer
                %s182 = sadd.s32 1, %s178
              $region34: #{fc_preprocess_forward.1} parent=27 // loop_footer_branch
                %177 = sbr.rel target = $region30
              $region35: #{fc_preprocess_forward.1} parent=27 // loop_exit
                _
            $region28: #{fc_preprocess_forward.1} parent=23 // pred_fallthru
              _
            // Predicated region
            $region36: #{fc_preprocess_forward.1} parent=23 // pred_check
              _
            $region37: #{fc_preprocess_forward.1} parent=23 // pred_check_branch
              %202 = sbr.rel target = $region39
            $region38: #{fc_preprocess_forward.1} parent=23 // pred_region
              _
            $region39: #{fc_preprocess_forward.1} parent=23 // pred_fallthru
              _
          $region24: #{fc_preprocess_forward.1} parent=19 // pred_fallthru
            _
          %203 = vnop
        $region20: #{fc_preprocess_forward.1} parent=15 // pred_fallthru
          _
        // Predicated region
        $region40: #{fc_preprocess_forward.1} parent=15 // pred_check
          %p204 = pneg %p81
        $region41: #{fc_preprocess_forward.1} parent=15 // pred_check_branch
          %206 = sbr.rel (%p204) target = $region43
        $region42: #{fc_preprocess_forward.1} parent=15 // pred_region
          %s207 = sand.u32 %s71, 1
          %s208 = scalar_lea.sflag [#allocation4], %s207
          %s209 = sand.u32 %s71, 1
          %s210 = smul.addr %s209, 256
          %s211 = scalar_lea.vmem [#allocation3], %s210
          %s212 = smul.u32 64, %s21
          %s214 = ssub.s32 4096, 4096
          %215 = vsyncadd %s208, %s214
          %s216 = smul.addr %s212, 3
          %s217 = sadd.s32 %s20, %s216
          %s218 = smul.addr %s217, 64
          %s219 = scalar_lea.hbm %s1, %s218
          %s220 = sshll.u32 %s211, 4
          %s221 = int_to_ptr.vmem [resolvable:$true] %s220
          %226 = dma.hbm_to_vmem [thread:$0]  %s219, 4096, %s221, %s208, 192, 64, 4
        $region43: #{fc_preprocess_forward.1} parent=15 // pred_fallthru
          _
        // Predicated region
        $region44: #{fc_preprocess_forward.1} parent=15 // pred_check
          %p227 = pneg %p107
        $region45: #{fc_preprocess_forward.1} parent=15 // pred_check_branch
          %229 = sbr.rel (%p227) target = $region47
        $region46: #{fc_preprocess_forward.1} parent=15 // pred_region
          %p230 = scmp.lt.s32.totalorder %s20, 2
          %s231 = scalar_select %p230, %s20, 2
          %s232 = scalar_lea.vmem %s2, %s231
        $region47: #{fc_preprocess_forward.1} parent=15 // pred_fallthru
          _
      $region16: #{fc_preprocess_forward.1} parent=5 // pred_fallthru
        _
      %p233 = scmp.le.s32.totalorder 1, %s12
      %p234 = scmp.lt.s32.totalorder %s12, 7
      %p235 = pnand %p233, %p234
      %p236 = pneg %p235
      // Predicated region
      $region48: #{fc_preprocess_forward.1} parent=5 // pred_check
        _
      $region49: #{fc_preprocess_forward.1} parent=5 // pred_check_branch
        %238 = sbr.rel (%p235) target = $region51
      $region50: #{fc_preprocess_forward.1} parent=5 // pred_region
        %s239 = ssub.s32 %s12, 1
        %s240 = sand.u32 %s46, 1
        %s241 = sand.u32 %s46, 1
        %s242 = smul.addr %s241, 64
        %s243 = scalar_lea.vmem [#allocation2], %s242
        // Predicated region
        $region52: #{fc_preprocess_forward.1} parent=50 // pred_check
          %p244 = pneg %p59
        $region53: #{fc_preprocess_forward.1} parent=50 // pred_check_branch
          %246 = sbr.rel (%p244) target = $region55
        $region54: #{fc_preprocess_forward.1} parent=50 // pred_region
          _
        $region55: #{fc_preprocess_forward.1} parent=50 // pred_fallthru
          _
        %s247 = sand.u32 %s74, 1
        %s248 = scalar_lea.sflag [#allocation4], %s247
        %s249 = sand.u32 %s74, 1
        %s250 = smul.addr %s249, 256
        %s251 = scalar_lea.vmem [#allocation3], %s250
        // Predicated region
        $region56: #{fc_preprocess_forward.1} parent=50 // pred_check
          %p252 = pneg %p87
        $region57: #{fc_preprocess_forward.1} parent=50 // pred_check_branch
          %254 = sbr.rel (%p252) target = $region59
        $region58: #{fc_preprocess_forward.1} parent=50 // pred_region
          %255 = dma.done %s248, 4096
        $region59: #{fc_preprocess_forward.1} parent=50 // pred_fallthru
          _
        %s256 = sand.u32 %s46, 1
        %s257 = sand.u32 %s46, 1
        %s258 = smul.addr %s257, 64
        %s259 = scalar_lea.vmem [#allocation2], %s258
        %p260 = pneg %p59
        %p261 = pneg %p56
        %s262 = sand.u32 %s74, 1
        %s263 = scalar_lea.sflag [#allocation4], %s262
        %s264 = sand.u32 %s74, 1
        %s265 = smul.addr %s264, 256
        %s266 = scalar_lea.vmem [#allocation3], %s265
        %p267 = pneg %p87
        %p268 = pneg %p84
        %p269 = scmp.lt.s32.totalorder %s23, 2
        %s270 = scalar_select %p269, %s23, 2
        %s271 = scalar_lea.vmem %s2, %s270
        %p272 = pneg %p113
        %p273 = pneg %p110
        %p274 = pneg %p141
        %p275 = pneg %p138
        %s276 = sand.u32 %s128, 1
        %s277 = sand.u32 %s128, 1
        %s278 = smul.addr %s277, 16
        %s279 = scalar_lea.vmem [#allocation5], %s278
        %s280 = smul.u32 2, %s22
        %s281 = smul.u32 4, %s24
        %s282 = smul.u32 64, %s24
        %p283 = scmp.lt.s32.totalorder %s23, 2
        %s284 = scalar_select %p283, %s23, 2
        %s285 = scalar_lea.vmem %s2, %s284
        %s286 = smul.u32 2, %s22
        %p288 = scmp.eq.s32.totalorder %s24, 0
        // Predicated region
        $region60: #{fc_preprocess_forward.1} parent=50 // pred_check
          %p289 = pneg %p288
        $region61: #{fc_preprocess_forward.1} parent=50 // pred_check_branch
          %291 = sbr.rel (%p289) target = $region63
        $region62: #{fc_preprocess_forward.1} parent=50 // pred_region
          %v292 = vld [vmem:[%s285] sm:$0x1]
          %v294 = vlaneseq
          %v295 = vshrl.u32 %v294, 7
          %v296 = vsub.s32 0, %v295
          %v297 = vrot.slane %v292, %v296
          %299 = vst [vmem:[%s279] sm:$0xff] %v297
          %300 = vst [vmem:[%s279 + $0x8] sm:$0xff] %v297
        $region63: #{fc_preprocess_forward.1} parent=50 // pred_fallthru
          _
        %v301 = vld [vmem:[%s279] sm:$0xff]
        %v302 = vld [vmem:[%s279 + $0x8] sm:$0xff]
        %v303 = vld [vmem:[%s243] sm:$0xff]
        %v304 = vld [vmem:[%s243 + $0x8] sm:$0xff]
        %v305 = vld [vmem:[%s243 + $0x10] sm:$0xff]
        %v306 = vld [vmem:[%s243 + $0x18] sm:$0xff]
        %v307 = vld [vmem:[%s243 + $0x20] sm:$0xff]
        %v308 = vld [vmem:[%s243 + $0x28] sm:$0xff]
        %v309 = vld [vmem:[%s243 + $0x30] sm:$0xff]
        %v310 = vld [vmem:[%s243 + $0x38] sm:$0xff]
        %v311 = vpack.c.bf16 %v307, %v303
        %v312 = vpack.c.bf16 %v308, %v304
        %v313 = vpack.c.bf16 %v309, %v305
        %v314 = vpack.c.bf16 %v310, %v306
        %v315 = vld [vmem:[%s251] sm:$0xf]
        %v316 = vld [vmem:[%s251 + $0x4] sm:$0xf]
        %v317 = vld [vmem:[%s251 + $0x8] sm:$0xf]
        %v318 = vld [vmem:[%s251 + $0xc] sm:$0xf]
        %v319 = vld [vmem:[%s251 + $0x10] sm:$0xf]
        %v320 = vld [vmem:[%s251 + $0x14] sm:$0xf]
        %v321 = vld [vmem:[%s251 + $0x18] sm:$0xf]
        %v322 = vld [vmem:[%s251 + $0x1c] sm:$0xf]
        %v323 = vld [vmem:[%s251 + $0x20] sm:$0xf]
        %v324 = vld [vmem:[%s251 + $0x24] sm:$0xf]
        %v325 = vld [vmem:[%s251 + $0x28] sm:$0xf]
        %v326 = vld [vmem:[%s251 + $0x2c] sm:$0xf]
        %v327 = vld [vmem:[%s251 + $0x30] sm:$0xf]
        %v328 = vld [vmem:[%s251 + $0x34] sm:$0xf]
        %v329 = vld [vmem:[%s251 + $0x38] sm:$0xf]
        %v330 = vld [vmem:[%s251 + $0x3c] sm:$0xf]
        %v331 = vld [vmem:[%s251 + $0x40] sm:$0xf]
        %v332 = vld [vmem:[%s251 + $0x44] sm:$0xf]
        %v333 = vld [vmem:[%s251 + $0x48] sm:$0xf]
        %v334 = vld [vmem:[%s251 + $0x4c] sm:$0xf]
        %v335 = vld [vmem:[%s251 + $0x50] sm:$0xf]
        %v336 = vld [vmem:[%s251 + $0x54] sm:$0xf]
        %v337 = vld [vmem:[%s251 + $0x58] sm:$0xf]
        %v338 = vld [vmem:[%s251 + $0x5c] sm:$0xf]
        %v339 = vld [vmem:[%s251 + $0x60] sm:$0xf]
        %v340 = vld [vmem:[%s251 + $0x64] sm:$0xf]
        %v341 = vld [vmem:[%s251 + $0x68] sm:$0xf]
        %v342 = vld [vmem:[%s251 + $0x6c] sm:$0xf]
        %v343 = vld [vmem:[%s251 + $0x70] sm:$0xf]
        %v344 = vld [vmem:[%s251 + $0x74] sm:$0xf]
        %v345 = vld [vmem:[%s251 + $0x78] sm:$0xf]
        %v346 = vld [vmem:[%s251 + $0x7c] sm:$0xf]
        %v347 = vld [vmem:[%s251 + $0x80] sm:$0xf]
        %v348 = vld [vmem:[%s251 + $0x84] sm:$0xf]
        %v349 = vld [vmem:[%s251 + $0x88] sm:$0xf]
        %v350 = vld [vmem:[%s251 + $0x8c] sm:$0xf]
        %v351 = vld [vmem:[%s251 + $0x90] sm:$0xf]
        %v352 = vld [vmem:[%s251 + $0x94] sm:$0xf]
        %v353 = vld [vmem:[%s251 + $0x98] sm:$0xf]
        %v354 = vld [vmem:[%s251 + $0x9c] sm:$0xf]
        %v355 = vld [vmem:[%s251 + $0xa0] sm:$0xf]
        %v356 = vld [vmem:[%s251 + $0xa4] sm:$0xf]
        %v357 = vld [vmem:[%s251 + $0xa8] sm:$0xf]
        %v358 = vld [vmem:[%s251 + $0xac] sm:$0xf]
        %v359 = vld [vmem:[%s251 + $0xb0] sm:$0xf]
        %v360 = vld [vmem:[%s251 + $0xb4] sm:$0xf]
        %v361 = vld [vmem:[%s251 + $0xb8] sm:$0xf]
        %v362 = vld [vmem:[%s251 + $0xbc] sm:$0xf]
        %v363 = vld [vmem:[%s251 + $0xc0] sm:$0xf]
        %v364 = vld [vmem:[%s251 + $0xc4] sm:$0xf]
        %v365 = vld [vmem:[%s251 + $0xc8] sm:$0xf]
        %v366 = vld [vmem:[%s251 + $0xcc] sm:$0xf]
        %v367 = vld [vmem:[%s251 + $0xd0] sm:$0xf]
        %v368 = vld [vmem:[%s251 + $0xd4] sm:$0xf]
        %v369 = vld [vmem:[%s251 + $0xd8] sm:$0xf]
        %v370 = vld [vmem:[%s251 + $0xdc] sm:$0xf]
        %v371 = vld [vmem:[%s251 + $0xe0] sm:$0xf]
        %v372 = vld [vmem:[%s251 + $0xe4] sm:$0xf]
        %v373 = vld [vmem:[%s251 + $0xe8] sm:$0xf]
        %v374 = vld [vmem:[%s251 + $0xec] sm:$0xf]
        %v375 = vld [vmem:[%s251 + $0xf0] sm:$0xf]
        %v376 = vld [vmem:[%s251 + $0xf4] sm:$0xf]
        %v377 = vld [vmem:[%s251 + $0xf8] sm:$0xf]
        %v378 = vld [vmem:[%s251 + $0xfc] sm:$0xf]
        %v443 = vunpack.c.l.b16 %v315
        %v444 = vunpack.c.l.b16 %v316
        %v445 = vunpack.c.l.b16 %v317
        %v446 = vunpack.c.l.b16 %v318
        %v447 = vunpack.c.l.b16 %v319
        %v448 = vunpack.c.l.b16 %v320
        %v449 = vunpack.c.l.b16 %v321
        %v450 = vunpack.c.l.b16 %v322
        %v451 = vunpack.c.l.b16 %v323
        %v452 = vunpack.c.l.b16 %v324
        %v453 = vunpack.c.l.b16 %v325
        %v454 = vunpack.c.l.b16 %v326
        %v455 = vunpack.c.l.b16 %v327
        %v456 = vunpack.c.l.b16 %v328
        %v457 = vunpack.c.l.b16 %v329
        %v458 = vunpack.c.l.b16 %v330
        %v459 = vunpack.c.l.b16 %v331
        %v460 = vunpack.c.l.b16 %v332
        %v461 = vunpack.c.l.b16 %v333
        %v462 = vunpack.c.l.b16 %v334
        %v463 = vunpack.c.l.b16 %v335
        %v464 = vunpack.c.l.b16 %v336
        %v465 = vunpack.c.l.b16 %v337
        %v466 = vunpack.c.l.b16 %v338
        %v467 = vunpack.c.l.b16 %v339
        %v468 = vunpack.c.l.b16 %v340
        %v469 = vunpack.c.l.b16 %v341
        %v470 = vunpack.c.l.b16 %v342
        %v471 = vunpack.c.l.b16 %v343
        %v472 = vunpack.c.l.b16 %v344
        %v473 = vunpack.c.l.b16 %v345
        %v474 = vunpack.c.l.b16 %v346
        %v475 = vunpack.c.l.b16 %v347
        %v476 = vunpack.c.l.b16 %v348
        %v477 = vunpack.c.l.b16 %v349
        %v478 = vunpack.c.l.b16 %v350
        %v479 = vunpack.c.l.b16 %v351
        %v480 = vunpack.c.l.b16 %v352
        %v481 = vunpack.c.l.b16 %v353
        %v482 = vunpack.c.l.b16 %v354
        %v483 = vunpack.c.l.b16 %v355
        %v484 = vunpack.c.l.b16 %v356
        %v485 = vunpack.c.l.b16 %v357
        %v486 = vunpack.c.l.b16 %v358
        %v487 = vunpack.c.l.b16 %v359
        %v488 = vunpack.c.l.b16 %v360
        %v489 = vunpack.c.l.b16 %v361
        %v490 = vunpack.c.l.b16 %v362
        %v491 = vunpack.c.l.b16 %v363
        %v492 = vunpack.c.l.b16 %v364
        %v493 = vunpack.c.l.b16 %v365
        %v494 = vunpack.c.l.b16 %v366
        %v495 = vunpack.c.l.b16 %v367
        %v496 = vunpack.c.l.b16 %v368
        %v497 = vunpack.c.l.b16 %v369
        %v498 = vunpack.c.l.b16 %v370
        %v499 = vunpack.c.l.b16 %v371
        %v500 = vunpack.c.l.b16 %v372
        %v501 = vunpack.c.l.b16 %v373
        %v502 = vunpack.c.l.b16 %v374
        %v503 = vunpack.c.l.b16 %v375
        %v504 = vunpack.c.l.b16 %v376
        %v505 = vunpack.c.l.b16 %v377
        %v506 = vunpack.c.l.b16 %v378
        %v507 = vpack.c.b16 %v444, %v443
        %v508 = vpack.c.b16 %v446, %v445
        %v509 = vpack.c.b16 %v448, %v447
        %v510 = vpack.c.b16 %v450, %v449
        %v511 = vpack.c.b16 %v452, %v451
        %v512 = vpack.c.b16 %v454, %v453
        %v513 = vpack.c.b16 %v456, %v455
        %v514 = vpack.c.b16 %v458, %v457
        %v515 = vpack.c.b16 %v460, %v459
        %v516 = vpack.c.b16 %v462, %v461
        %v517 = vpack.c.b16 %v464, %v463
        %v518 = vpack.c.b16 %v466, %v465
        %v519 = vpack.c.b16 %v468, %v467
        %v520 = vpack.c.b16 %v470, %v469
        %v521 = vpack.c.b16 %v472, %v471
        %v522 = vpack.c.b16 %v474, %v473
        %v523 = vpack.c.b16 %v476, %v475
        %v524 = vpack.c.b16 %v478, %v477
        %v525 = vpack.c.b16 %v480, %v479
        %v526 = vpack.c.b16 %v482, %v481
        %v527 = vpack.c.b16 %v484, %v483
        %v528 = vpack.c.b16 %v486, %v485
        %v529 = vpack.c.b16 %v488, %v487
        %v530 = vpack.c.b16 %v490, %v489
        %v531 = vpack.c.b16 %v492, %v491
        %v532 = vpack.c.b16 %v494, %v493
        %v533 = vpack.c.b16 %v496, %v495
        %v534 = vpack.c.b16 %v498, %v497
        %v535 = vpack.c.b16 %v500, %v499
        %v536 = vpack.c.b16 %v502, %v501
        %v537 = vpack.c.b16 %v504, %v503
        %v538 = vpack.c.b16 %v506, %v505
        %571 = vmatprep.subr.bf16.mxu0 0
        %572 = vmatpush1.bf16.msra.mxu0 %v507
        %573 = vmatprep.subr.bf16.mxu0 0
        %574 = vmatpush1.bf16.msra.mxu0 %v508
        %575 = vmatprep.subr.bf16.mxu0 0
        %576 = vmatpush1.bf16.msra.mxu0 %v509
        %577 = vmatprep.subr.bf16.mxu0 0
        %578 = vmatpush1.bf16.msra.mxu0 %v510
        %579 = vmatprep.subr.bf16.mxu0 0
        %580 = vmatpush1.bf16.msra.mxu0 %v511
        %581 = vmatprep.subr.bf16.mxu0 0
        %582 = vmatpush1.bf16.msra.mxu0 %v512
        %583 = vmatprep.subr.bf16.mxu0 0
        %584 = vmatpush1.bf16.msra.mxu0 %v513
        %585 = vmatprep.subr.bf16.mxu0 0
        %586 = vmatpush1.bf16.msra.mxu0 %v514
        %587 = vmatprep.subr.bf16.mxu0 0
        %588 = vmatpush1.bf16.msra.mxu0 %v515
        %589 = vmatprep.subr.bf16.mxu0 0
        %590 = vmatpush1.bf16.msra.mxu0 %v516
        %591 = vmatprep.subr.bf16.mxu0 0
        %592 = vmatpush1.bf16.msra.mxu0 %v517
        %593 = vmatprep.subr.bf16.mxu0 0
        %594 = vmatpush1.bf16.msra.mxu0 %v518
        %595 = vmatprep.subr.bf16.mxu0 0
        %596 = vmatpush1.bf16.msra.mxu0 %v519
        %597 = vmatprep.subr.bf16.mxu0 0
        %598 = vmatpush1.bf16.msra.mxu0 %v520
        %599 = vmatprep.subr.bf16.mxu0 0
        %600 = vmatpush1.bf16.msra.mxu0 %v521
        %601 = vmatprep.subr.bf16.mxu0 0
        %602 = vmatpush1.bf16.msra.mxu0 %v522
        %603 = vmatprep.mubr.bf16.mxu0 %v312
        %604 = vmatmul.mubr.bf16.gmra.mrb[0].mxu0 %v311
        %v605 = vpop.f32.mrb[0].mxu0
        %v606 = vadd.f32 0.0, %v605
        %v607 = vpop.f32.mrb[0].mxu0
        %v608 = vpop.f32.mrb[0].mxu0
        %v609 = vadd.f32 0.0, %v608
        %v610 = vpop.f32.mrb[0].mxu0
        %611 = vdwg.mxu0
        %612 = vmatprep.subr.bf16.mxu0 0
        %613 = vmatpush1.bf16.msra.mxu0 %v523
        %614 = vmatprep.subr.bf16.mxu0 0
        %615 = vmatpush1.bf16.msra.mxu0 %v524
        %616 = vmatprep.subr.bf16.mxu0 0
        %617 = vmatpush1.bf16.msra.mxu0 %v525
        %618 = vmatprep.subr.bf16.mxu0 0
        %619 = vmatpush1.bf16.msra.mxu0 %v526
        %620 = vmatprep.subr.bf16.mxu0 0
        %621 = vmatpush1.bf16.msra.mxu0 %v527
        %622 = vmatprep.subr.bf16.mxu0 0
        %623 = vmatpush1.bf16.msra.mxu0 %v528
        %624 = vmatprep.subr.bf16.mxu0 0
        %625 = vmatpush1.bf16.msra.mxu0 %v529
        %626 = vmatprep.subr.bf16.mxu0 0
        %627 = vmatpush1.bf16.msra.mxu0 %v530
        %628 = vmatprep.subr.bf16.mxu0 0
        %629 = vmatpush1.bf16.msra.mxu0 %v531
        %630 = vmatprep.subr.bf16.mxu0 0
        %631 = vmatpush1.bf16.msra.mxu0 %v532
        %632 = vmatprep.subr.bf16.mxu0 0
        %633 = vmatpush1.bf16.msra.mxu0 %v533
        %634 = vmatprep.subr.bf16.mxu0 0
        %635 = vmatpush1.bf16.msra.mxu0 %v534
        %636 = vmatprep.subr.bf16.mxu0 0
        %637 = vmatpush1.bf16.msra.mxu0 %v535
        %638 = vmatprep.subr.bf16.mxu0 0
        %639 = vmatpush1.bf16.msra.mxu0 %v536
        %640 = vmatprep.subr.bf16.mxu0 0
        %641 = vmatpush1.bf16.msra.mxu0 %v537
        %642 = vmatprep.subr.bf16.mxu0 0
        %643 = vmatpush1.bf16.msra.mxu0 %v538
        %644 = vmatprep.mubr.bf16.mxu0 %v314
        %645 = vmatmul.mubr.bf16.gmra.mrb[0].mxu0 %v313
        %v646 = vpop.f32.mrb[0].mxu0
        %v647 = vadd.f32 %v606, %v646
        %v648 = vpop.f32.mrb[0].mxu0
        %v649 = vpop.f32.mrb[0].mxu0
        %v650 = vadd.f32 %v609, %v649
        %v651 = vpop.f32.mrb[0].mxu0
        %652 = vdwg.mxu0
        %v653 = vadd.f32 %v301, %v647
        %v654 = vadd.f32 %v302, %v650
        %655 = vst [vmem:[%s279] sm:$0xff] %v653
        %656 = vst [vmem:[%s279 + $0x8] sm:$0xff] %v654
        %s657 = sand.u32 %s128, 1
        %s658 = sand.u32 %s128, 1
        %s659 = smul.addr %s658, 16
        %s660 = scalar_lea.vmem [#allocation5], %s659
        // Predicated region
        $region64: #{fc_preprocess_forward.1} parent=50 // pred_check
          %p661 = pneg %p138
        $region65: #{fc_preprocess_forward.1} parent=50 // pred_check_branch
          %663 = sbr.rel (%p661) target = $region67
        $region66: #{fc_preprocess_forward.1} parent=50 // pred_region
          %s664 = smul.u32 2, %s22
          %s665 = smul.addr %s664, 3
          %s666 = sadd.s32 %s23, %s665
          %s667 = smul.addr %s666, 8
          %s668 = scalar_lea.vmem %s3, %s667
          // Predicated region
          $region68: #{fc_preprocess_forward.1} parent=66 // pred_check
            _
          $region69: #{fc_preprocess_forward.1} parent=66 // pred_check_branch
            %670 = sbr.rel (0) target = $region71
          $region70: #{fc_preprocess_forward.1} parent=66 // pred_region
            // Predicated region
            $region72: #{fc_preprocess_forward.1} parent=70 // pred_check
              _
            $region73: #{fc_preprocess_forward.1} parent=70 // pred_check_branch
              %672 = sbr.rel (0) target = $region75
            $region74: #{fc_preprocess_forward.1} parent=70 // pred_region
              // Predicated region
              $region87: #{fc_preprocess_forward.1} parent=74 // pred_check
                _
              $region88: #{fc_preprocess_forward.1} parent=74 // pred_check_branch
                %689 = sbr.rel (0) target = $region90
              $region89: #{fc_preprocess_forward.1} parent=74 // pred_region
                loop: start=0, step=1, limit=1
                $region91: #{fc_preprocess_forward.1} parent=89 // loop_pre_header
                  _
                $region92: #{fc_preprocess_forward.1} parent=89 // loop_header
                  %s691 = sphi 0, %s695
                  %p692 = scmp.ge.s32.totalorder %s691, 1
                  %s696 = sphi %s660, %s660
                  %s697 = sphi %s668, %s668
                $region93: #{fc_preprocess_forward.1} parent=89 // loop_header_branch
                  %694 = sbr.rel (%p692) target = $region97
                $region94: #{fc_preprocess_forward.1} parent=89 // loop_body
                  %v698 = vld [vmem:[%s696] sm:$0xff]
                  %699 = vst [vmem:[%s697] sm:$0xff] %v698
                  %v700 = vld [vmem:[%s696 + $0x8] sm:$0xff]
                  %701 = vst [vmem:[%s697 + $0x18] sm:$0xff] %v700
                $region95: #{fc_preprocess_forward.1} parent=89 // loop_footer
                  %s695 = sadd.s32 1, %s691
                $region96: #{fc_preprocess_forward.1} parent=89 // loop_footer_branch
                  %690 = sbr.rel target = $region92
                $region97: #{fc_preprocess_forward.1} parent=89 // loop_exit
                  _
              $region90: #{fc_preprocess_forward.1} parent=74 // pred_fallthru
                _
              // Predicated region
              $region98: #{fc_preprocess_forward.1} parent=74 // pred_check
                _
              $region99: #{fc_preprocess_forward.1} parent=74 // pred_check_branch
                %703 = sbr.rel target = $region101
              $region100: #{fc_preprocess_forward.1} parent=74 // pred_region
                _
              $region101: #{fc_preprocess_forward.1} parent=74 // pred_fallthru
                _
            $region75: #{fc_preprocess_forward.1} parent=70 // pred_fallthru
              _
            // Predicated region
            $region76: #{fc_preprocess_forward.1} parent=70 // pred_check
              _
            $region77: #{fc_preprocess_forward.1} parent=70 // pred_check_branch
              %674 = sbr.rel target = $region79
            $region78: #{fc_preprocess_forward.1} parent=70 // pred_region
              loop: start=0, step=1, limit=1
              $region80: #{fc_preprocess_forward.1} parent=78 // loop_pre_header
                _
              $region81: #{fc_preprocess_forward.1} parent=78 // loop_header
                %s677 = sphi 0, %s681
                %p678 = scmp.ge.s32.totalorder %s677, 1
                %s682 = sphi %s660, %s660
                %s683 = sphi %s668, %s668
              $region82: #{fc_preprocess_forward.1} parent=78 // loop_header_branch
                %680 = sbr.rel (%p678) target = $region86
              $region83: #{fc_preprocess_forward.1} parent=78 // loop_body
                %v684 = vld [vmem:[%s682] sm:$0xff]
                %685 = vst [vmem:[%s683] sm:$0xff] %v684
                %v686 = vld [vmem:[%s682 + $0x8] sm:$0xff]
                %687 = vst [vmem:[%s683 + $0x18] sm:$0xff] %v686
              $region84: #{fc_preprocess_forward.1} parent=78 // loop_footer
                %s681 = sadd.s32 1, %s677
              $region85: #{fc_preprocess_forward.1} parent=78 // loop_footer_branch
                %676 = sbr.rel target = $region81
              $region86: #{fc_preprocess_forward.1} parent=78 // loop_exit
                _
            $region79: #{fc_preprocess_forward.1} parent=70 // pred_fallthru
              _
          $region71: #{fc_preprocess_forward.1} parent=66 // pred_fallthru
            _
          %704 = vnop
        $region67: #{fc_preprocess_forward.1} parent=50 // pred_fallthru
          _
      $region51: #{fc_preprocess_forward.1} parent=5 // pred_fallthru
        _
      %p705 = scmp.le.s32.totalorder 2, %s12
      // Predicated region
      $region102: #{fc_preprocess_forward.1} parent=5 // pred_check
        %p706 = pneg %p705
      $region103: #{fc_preprocess_forward.1} parent=5 // pred_check_branch
        %708 = sbr.rel (%p706) target = $region105
      $region104: #{fc_preprocess_forward.1} parent=5 // pred_region
        %s709 = ssub.s32 %s12, 2
        // Predicated region
        $region106: #{fc_preprocess_forward.1} parent=104 // pred_check
          %p710 = pneg %p144
        $region107: #{fc_preprocess_forward.1} parent=104 // pred_check_branch
          %712 = sbr.rel (%p710) target = $region109
        $region108: #{fc_preprocess_forward.1} parent=104 // pred_region
          %s713 = sand.u32 %s129, 1
          %s714 = sand.u32 %s129, 1
          %s715 = smul.addr %s714, 16
          %s716 = scalar_lea.vmem [#allocation5], %s715
        $region109: #{fc_preprocess_forward.1} parent=104 // pred_fallthru
          _
      $region105: #{fc_preprocess_forward.1} parent=5 // pred_fallthru
        _
    $region6: #{fc_preprocess_forward.1} parent=1 // loop_footer
      %s16 = sadd.s32 1, %s12
    $region7: #{fc_preprocess_forward.1} parent=1 // loop_footer_branch
      %11 = sbr.rel target = $region3
    $region8: #{fc_preprocess_forward.1} parent=1 // loop_exit
      _
    %717 = vsyncpa [#allocation4], 1
    %s718 = scalar_lea.sflag [#allocation4], 1
    %719 = vsyncpa %s718, 1

</llo_original>
